<compile_context>
chip_gen: v7x
topology: tpu7x:2x2x1
jax: 0.10.0
libtpu: 0.0.40
codegen_flags: <defaults>
</compile_context>

<pallas_src>
import jax
import jax.numpy as jnp
from jax.experimental import pallas as pl
from jax.experimental.pallas import tpu as pltpu


_SQRT_2_OVER_PI = 0.7978845608028654


def _gelu_tanh(x):
    # Tanh-approximate GELU, matching F.gelu(..., approximate='tanh').
    c = jnp.float32(_SQRT_2_OVER_PI)
    return 0.5 * x * (1.0 + jnp.tanh(c * (x + 0.044715 * x * x * x)))


# ----------------------------------------------------------------------------
# Kernels (refs are 2-D: the expert dim is squeezed by the BlockSpec).
# ----------------------------------------------------------------------------
def _mlp_kernel_accumulate_out(x_ref, w1_ref, w2_ref, o_ref):
    """f32-output variant: accumulate directly into the resident out block."""
    f = pl.program_id(2)

    w2 = w2_ref[...]                                            # (tf, H)
    h = jnp.dot(x_ref[...], w1_ref[...],
                preferred_element_type=jnp.float32)             # (tm, tf)
    h = _gelu_tanh(h)
    partial = jnp.dot(h.astype(w2.dtype), w2,
                      preferred_element_type=jnp.float32)       # (tm, H)

    @pl.when(f == 0)
    def _():
        o_ref[...] = partial

    @pl.when(f > 0)
    def _():
        o_ref[...] = o_ref[...] + partial


def _mlp_kernel_scratch(x_ref, w1_ref, w2_ref, o_ref, acc_ref):
    """Narrow-output variant: f32 scratch accumulator, cast on last f step."""
    f = pl.program_id(2)
    nf = pl.num_programs(2)

    @pl.when(f == 0)
    def _():
        acc_ref[...] = jnp.zeros_like(acc_ref)

    w2 = w2_ref[...]                                            # (tf, H)
    h = jnp.dot(x_ref[...], w1_ref[...],
                preferred_element_type=jnp.float32)             # (tm, tf)
    h = _gelu_tanh(h)
    acc_ref[...] += jnp.dot(h.astype(w2.dtype), w2,
                            preferred_element_type=jnp.float32)  # (tm, H)

    @pl.when(f == nf - 1)
    def _():
        o_ref[...] = acc_ref[...].astype(o_ref.dtype)


# ----------------------------------------------------------------------------
# Hardware detection and tile selection.
# ----------------------------------------------------------------------------
def _tpu_hardware():
    """Return (vmem_capacity_bytes, is_v7x); conservative fallbacks."""
    kind = ""
    try:
        kind = jax.devices()[0].device_kind.lower()
    except Exception:
        pass
    is_v7x = "7" in kind
    vmem = None
    try:
        vmem = int(pltpu.get_tpu_info().vmem_capacity_bytes)
    except Exception:
        vmem = None
    if not vmem or vmem <= 0:
        vmem = (64 << 20) if is_v7x else (128 << 20)
    return vmem, is_v7x


def _vmem_footprint(tm, tf, H, in_bytes, out_bytes, need_scratch):
    """Estimated VMEM footprint for a (tm, tf) tiling (double-buffered)."""
    b = 2 * tm * H * in_bytes          # x tile
    b += 2 * H * tf * in_bytes         # w1 slab
    b += 2 * tf * H * in_bytes         # w2 slab
    b += 2 * tm * H * out_bytes        # out tile
    if need_scratch:
        b += tm * H * 4                # f32 accumulator scratch
    b += 2 * tm * tf * 4               # f32 intermediate (x @ w1) + GELU temps
    return b


def _legal_tm(T, d, min_align):
    return d == T or (d % min_align == 0)


def _pick_tm(T, fits, min_align, min_tiles):
    """Largest divisor of T (fewest weight streams) that is legal and fits."""
    for d in range(T, 0, -1):
        if T % d:
            continue
        if T // d < min_tiles:
            continue
        if not _legal_tm(T, d, min_align):
            continue
        if fits(d):
            return d
    return None


def _pick_tf(F_dim, cap, fits):
    """Largest legal FFN slab <= cap that fits; falls back to smallest legal."""
    for d in range(min(F_dim, cap), 0, -1):
        if F_dim % d:
            continue
        if d != F_dim and d % 128 != 0:
            continue
        if fits(d):
            return d
    legal = [d for d in range(1, F_dim + 1)
             if F_dim % d == 0 and (d == F_dim or d % 128 == 0)]
    return legal[0]


# ----------------------------------------------------------------------------
# Public wrapper.
# ----------------------------------------------------------------------------
def expert_mlp(x, w1, w2, *, compute_dtype=None, interpret=False):
    """x: (E, T, H), w1: (E, H, F), w2: (E, F, H) -> (E, T, H)."""
    E, T, H = x.shape
    F_dim = w1.shape[2]
    assert w1.shape == (E, H, F_dim)
    assert w2.shape == (E, F_dim, H)

    out_dtype = x.dtype
    if compute_dtype is not None:
        x = x.astype(compute_dtype)
        w1 = w1.astype(compute_dtype)
        w2 = w2.astype(compute_dtype)

    in_bytes = jnp.dtype(x.dtype).itemsize
    out_bytes = jnp.dtype(out_dtype).itemsize

    vmem_cap, is_v7x = _tpu_hardware()
    # Headroom for Mosaic internal scratch / semaphores:
    #   v7x: 64 MiB - 10 MiB = 54 MiB; v5e/v6e: 128 MiB - 16 MiB = 112 MiB.
    budget = vmem_cap - max(10 << 20, vmem_cap // 8)

    accumulate_in_out = (out_dtype == jnp.float32)
    need_scratch = not accumulate_in_out

    # Non-full token tiles must respect sublane packing (16 for sub-32-bit).
    min_align = 16 if in_bytes < 4 else 8

    tf_probe = min(F_dim, 512)
    tm_fits = lambda tm: _vmem_footprint(
        tm, tf_probe, H, in_bytes, out_bytes, need_scratch) <= budget

    # v7x has two TensorCores: keep E * (T//tm) >= 2 so both get work.
    min_tiles = 2 if (is_v7x and E == 1) else 1
    tm = _pick_tm(T, tm_fits, min_align, min_tiles)
    if tm is None and min_tiles > 1:
        tm = _pick_tm(T, tm_fits, min_align, 1)
    if tm is None:
        legal = [d for d in range(1, T + 1)
                 if T % d == 0 and _legal_tm(T, d, min_align)]
        tm = legal[0]

    tf_cap = 512 if is_v7x else 1024
    tf_fits = lambda tf: _vmem_footprint(
        tm, tf, H, in_bytes, out_bytes, need_scratch) <= budget
    tf = _pick_tf(F_dim, tf_cap, tf_fits)

    footprint = _vmem_footprint(tm, tf, H, in_bytes, out_bytes, need_scratch)
    vmem_limit = int(min(max(budget, footprint + (4 << 20)),
                         vmem_cap - (2 << 20)))

    grid = (E, T // tm, F_dim // tf)
    token_tiles = T // tm

    # Honest byte count: weights are re-read once per token tile.
    cost = pl.CostEstimate(
        flops=4 * E * T * H * F_dim,          # two matmuls, 2*T*H*F each
        transcendentals=E * T * F_dim,        # tanh in the GELU
        bytes_accessed=int(x.size * in_bytes
                           + token_tiles * (w1.size + w2.size) * in_bytes
                           + E * T * H * out_bytes),
    )

    # Leading expert dim is squeezed so kernel refs are 2-D for the MXU.
    in_specs = [
        pl.BlockSpec((pl.Squeezed(), tm, H), lambda e, t, f: (e, t, 0)),
        pl.BlockSpec((pl.Squeezed(), H, tf), lambda e, t, f: (e, 0, f)),
        pl.BlockSpec((pl.Squeezed(), tf, H), lambda e, t, f: (e, f, 0)),
    ]
    out_spec = pl.BlockSpec((pl.Squeezed(), tm, H), lambda e, t, f: (e, t, 0))

    if accumulate_in_out:
        kernel = _mlp_kernel_accumulate_out
        scratch_shapes = []
    else:
        kernel = _mlp_kernel_scratch
        scratch_shapes = [pltpu.VMEM((tm, H), jnp.float32)]

    return pl.pallas_call(
        kernel,
        out_shape=jax.ShapeDtypeStruct((E, T, H), out_dtype),
        grid_spec=pltpu.PrefetchScalarGridSpec(
            num_scalar_prefetch=0,
            grid=grid,
            in_specs=in_specs,
            out_specs=out_spec,
            scratch_shapes=scratch_shapes,
        ),
        compiler_params=pltpu.CompilerParams(
            dimension_semantics=("parallel", "parallel", "arbitrary"),
            vmem_limit_bytes=vmem_limit,
        ),
        cost_estimate=cost,
        interpret=interpret,
    )(x, w1, w2)


def _reference(x, w1, w2):
    h = jnp.einsum("eth,ehf->etf", x.astype(jnp.float32),
                   w1.astype(jnp.float32))
    h = _gelu_tanh(h)
    return jnp.einsum("etf,efh->eth", h, w2.astype(jnp.float32))


if __name__ == "__main__":
    # Small deterministic shapes consistent with the module:
    #   num_experts_per_rank = 2, tokens_per_expert = 16,
    #   hidden_size = 128, ffn_hidden_size = 256.
    num_experts = 2
    tokens = 16
    hidden = 128
    ffn_hidden = 256

    key = jax.random.PRNGKey(0)
    kx, k1, k2 = jax.random.split(key, 3)

    x = jax.random.normal(kx, (num_experts, tokens, hidden), dtype=jnp.float32)
    # Deterministic "init_method" stand-ins (scaled normal init).
    w1 = 0.02 * jax.random.normal(k1, (num_experts, hidden, ffn_hidden),
                                  dtype=jnp.float32)
    w2 = 0.02 * jax.random.normal(k2, (num_experts, ffn_hidden, hidden),
                                  dtype=jnp.float32)

    ref = jax.block_until_ready(_reference(x, w1, w2))

    # 1) Module-exact f32 path (accumulates directly into the f32 out block).
    out = jax.block_until_ready(expert_mlp(x, w1, w2))
    assert out.shape == (num_experts, tokens, hidden)
    assert out.dtype == jnp.float32
    assert jnp.allclose(out, ref, atol=1e-4, rtol=1e-4)

    # 2) bf16 compute path (halves weight HBM bytes, native MXU rate);
    #    accumulation stays in f32.
    out_bf16c = jax.block_until_ready(
        expert_mlp(x, w1, w2, compute_dtype=jnp.bfloat16))
    assert out_bf16c.shape == (num_experts, tokens, hidden)
    assert jnp.allclose(out_bf16c, ref, atol=1e-2, rtol=5e-2)

    # 3) bf16 storage end-to-end (exercises the scratch-accumulator variant).
    out_bf16 = jax.block_until_ready(
        expert_mlp(x.astype(jnp.bfloat16), w1.astype(jnp.bfloat16),
                   w2.astype(jnp.bfloat16)))
    assert out_bf16.dtype == jnp.bfloat16
    assert jnp.allclose(out_bf16.astype(jnp.float32), ref,
                        atol=1e-2, rtol=5e-2)

    print("KERNEL_OK")
</pallas_src>

<mosaic_0001>
module attributes {stable_mosaic.version = 11 : i64} {
  func.func @_mlp_kernel_accumulate_out(%arg0: i32, %arg1: i32, %arg2: i32, %arg3: memref<1x16x128xf32, #tpu.memory_space<vmem>>, %arg4: memref<1x128x256xf32, #tpu.memory_space<vmem>>, %arg5: memref<1x256x128xf32, #tpu.memory_space<vmem>>, %arg6: memref<1x16x128xf32, #tpu.memory_space<vmem>>) attributes {dimension_semantics = [#tpu.dimension_semantics<parallel>, #tpu.dimension_semantics<parallel>, #tpu.dimension_semantics<arbitrary>], iteration_bounds = array<i64: 2, 1, 1>, scalar_prefetch = 0 : i64, scratch_operands = 0 : i64, tpu.core_type = #tpu.core_type<tc>, window_params = [{transform_indices = @transform_0, window_bounds = array<i64: 1, 16, 128>}, {transform_indices = @transform_1, window_bounds = array<i64: 1, 128, 256>}, {transform_indices = @transform_2, window_bounds = array<i64: 1, 256, 128>}, {transform_indices = @transform_3, window_bounds = array<i64: 1, 16, 128>}]} {
    %c0 = arith.constant 0 : index
    %c0_0 = arith.constant 0 : index
    %c0_1 = arith.constant 0 : index
    %0 = vector.load %arg5[%c0, %c0_0, %c0_1] : memref<1x256x128xf32, #tpu.memory_space<vmem>>, vector<1x256x128xf32>
    %1 = vector.shape_cast %0 : vector<1x256x128xf32> to vector<256x128xf32>
    %c0_2 = arith.constant 0 : index
    %c0_3 = arith.constant 0 : index
    %c0_4 = arith.constant 0 : index
    %2 = vector.load %arg3[%c0_2, %c0_3, %c0_4] : memref<1x16x128xf32, #tpu.memory_space<vmem>>, vector<1x16x128xf32>
    %3 = vector.shape_cast %2 : vector<1x16x128xf32> to vector<16x128xf32>
    %c0_5 = arith.constant 0 : index
    %c0_6 = arith.constant 0 : index
    %c0_7 = arith.constant 0 : index
    %4 = vector.load %arg4[%c0_5, %c0_6, %c0_7] : memref<1x128x256xf32, #tpu.memory_space<vmem>>, vector<1x128x256xf32>
    %5 = vector.shape_cast %4 : vector<1x128x256xf32> to vector<128x256xf32>
    %cst = arith.constant dense<0.000000e+00> : vector<16x256xf32>
    %6 = tpu.matmul %3, %5, %cst {dimension_numbers = #tpu.dot_dimension_numbers<[1], [0], [0], [1], [0, 0, 1, 1], [], []>} : vector<16x128xf32>, vector<128x256xf32>, vector<16x256xf32> -> vector<16x256xf32>
    %cst_8 = arith.constant 5.000000e-01 : f32
    %7 = vector.broadcast %cst_8 : f32 to vector<16x256xf32>
    %8 = arith.mulf %7, %6 : vector<16x256xf32>
    %cst_9 = arith.constant 4.471500e-02 : f32
    %9 = vector.broadcast %cst_9 : f32 to vector<16x256xf32>
    %10 = arith.mulf %9, %6 : vector<16x256xf32>
    %11 = arith.mulf %10, %6 : vector<16x256xf32>
    %12 = arith.mulf %11, %6 : vector<16x256xf32>
    %13 = arith.addf %6, %12 : vector<16x256xf32>
    %cst_10 = arith.constant 0.797884583 : f32
    %14 = vector.broadcast %cst_10 : f32 to vector<16x256xf32>
    %15 = arith.mulf %14, %13 : vector<16x256xf32>
    %16 = math.tanh %15 : vector<16x256xf32>
    %cst_11 = arith.constant 1.000000e+00 : f32
    %17 = vector.broadcast %cst_11 : f32 to vector<16x256xf32>
    %18 = arith.addf %17, %16 : vector<16x256xf32>
    %19 = arith.mulf %8, %18 : vector<16x256xf32>
    %cst_12 = arith.constant dense<0.000000e+00> : vector<16x128xf32>
    %20 = tpu.matmul %19, %1, %cst_12 {dimension_numbers = #tpu.dot_dimension_numbers<[1], [0], [0], [1], [0, 0, 1, 1], [], []>} : vector<16x256xf32>, vector<256x128xf32>, vector<16x128xf32> -> vector<16x128xf32>
    %c0_i32 = arith.constant 0 : i32
    %21 = arith.cmpi eq, %arg2, %c0_i32 : i32
    %22 = arith.extui %21 : i1 to i32
    %c0_i32_13 = arith.constant 0 : i32
    %23 = arith.cmpi ne, %22, %c0_i32_13 : i32
    scf.if %23 {
      %c0_16 = arith.constant 0 : index
      %c0_17 = arith.constant 0 : index
      %c0_18 = arith.constant 0 : index
      %27 = vector.load %arg6[%c0_16, %c0_17, %c0_18] : memref<1x16x128xf32, #tpu.memory_space<vmem>>, vector<1x16x128xf32>
      %28 = vector.shape_cast %27 : vector<1x16x128xf32> to vector<16x128xf32>
      %29 = vector.shape_cast %20 : vector<16x128xf32> to vector<1x16x128xf32>
      tpu.vector_store %arg6[%c0_16, %c0_17, %c0_18], %29 {strides = array<i32>} : memref<1x16x128xf32, #tpu.memory_space<vmem>>, vector<1x16x128xf32>,
    } else {
    }
    %c0_i32_14 = arith.constant 0 : i32
    %24 = arith.cmpi sgt, %arg2, %c0_i32_14 : i32
    %25 = arith.extui %24 : i1 to i32
    %c0_i32_15 = arith.constant 0 : i32
    %26 = arith.cmpi ne, %25, %c0_i32_15 : i32
    scf.if %26 {
      %c0_16 = arith.constant 0 : index
      %c0_17 = arith.constant 0 : index
      %c0_18 = arith.constant 0 : index
      %27 = vector.load %arg6[%c0_16, %c0_17, %c0_18] : memref<1x16x128xf32, #tpu.memory_space<vmem>>, vector<1x16x128xf32>
      %28 = vector.shape_cast %27 : vector<1x16x128xf32> to vector<16x128xf32>
      %29 = arith.addf %28, %20 : vector<16x128xf32>
      %c0_19 = arith.constant 0 : index
      %c0_20 = arith.constant 0 : index
      %c0_21 = arith.constant 0 : index
      %30 = vector.load %arg6[%c0_19, %c0_20, %c0_21] : memref<1x16x128xf32, #tpu.memory_space<vmem>>, vector<1x16x128xf32>
      %31 = vector.shape_cast %30 : vector<1x16x128xf32> to vector<16x128xf32>
      %32 = vector.shape_cast %29 : vector<16x128xf32> to vector<1x16x128xf32>
      tpu.vector_store %arg6[%c0_19, %c0_20, %c0_21], %32 {strides = array<i32>} : memref<1x16x128xf32, #tpu.memory_space<vmem>>, vector<1x16x128xf32>,
    } else {
    }
    return
  }
  func.func @transform_0(%arg0: i32, %arg1: i32, %arg2: i32) -> (i32, i32, i32) {
    %c0_i32 = arith.constant 0 : i32
    %c0_i32_0 = arith.constant 0 : i32
    return %arg0, %arg1, %c0_i32 : i32, i32, i32
  }
  func.func @transform_1(%arg0: i32, %arg1: i32, %arg2: i32) -> (i32, i32, i32) {
    %c0_i32 = arith.constant 0 : i32
    %c0_i32_0 = arith.constant 0 : i32
    return %arg0, %c0_i32, %arg2 : i32, i32, i32
  }
  func.func @transform_2(%arg0: i32, %arg1: i32, %arg2: i32) -> (i32, i32, i32) {
    %c0_i32 = arith.constant 0 : i32
    %c0_i32_0 = arith.constant 0 : i32
    return %arg0, %arg2, %c0_i32 : i32, i32, i32
  }
  func.func @transform_3(%arg0: i32, %arg1: i32, %arg2: i32) -> (i32, i32, i32) {
    %c0_i32 = arith.constant 0 : i32
    %c0_i32_0 = arith.constant 0 : i32
    return %arg0, %arg1, %c0_i32 : i32, i32, i32
  }
}

</mosaic_0001>

<llo_original>
// kernel: tpu_custom_call.1
$region0: #{tpu_custom_call.1}
  #allocation0 [shape = 'u32[]', space=smem, size = 0x4, offset = 0x4, fixed_abs, tag = 'smem constant byte address 0x4 - core index']
  #allocation1 [shape = 'u32[144,128]{1,0:T(1,128)}', space=vmem, size = 0x12000, scoped, tag = 'internal scratch']
  %s0 = inlined_call_operand.hbm [shape: f32[2,16,128], index: 0, kind: input, shape index: {}]
  %s1 = inlined_call_operand.hbm [shape: f32[2,128,256], index: 1, kind: input, shape index: {}]
  %s2 = inlined_call_operand.hbm [shape: f32[2,256,128], index: 2, kind: input, shape index: {}]
  %s3 = inlined_call_operand.hbm [shape: f32[2,16,128], index: 3, kind: output, shape index: {}]
  %s4 = sld [smem:[#allocation0]]
  $region65: #{tpu_custom_call.1} parent=0
    _
  %s6 = ssub.s32 1, %s4
  %s7 = scalar_select 0, %s6, %s4
  $region1: #{tpu_custom_call.1} parent=0
    #allocation2 [shape = 'u8[16384]{0}', space=vmem, size = 0x4000, scoped, tag = 'input window, operand 0']
    #allocation3 [shape = 's32[2]{0}', space=sflag, size = 0x8, scoped, tag = 'scoped memory for tpu_custom_call.1']
    #allocation4 [shape = 's32[2]{0}', space=sflag, size = 0x8, scoped, tag = 'scoped memory for tpu_custom_call.1']
    #allocation5 [shape = 'u8[262144]{0}', space=vmem, size = 0x40000, scoped, tag = 'input window, operand 1']
    #allocation6 [shape = 's32[2]{0}', space=sflag, size = 0x8, scoped, tag = 'scoped memory for tpu_custom_call.1']
    #allocation7 [shape = 'u8[262144]{0}', space=vmem, size = 0x40000, scoped, tag = 'input window, operand 2']
    #allocation8 [shape = 'u8[16384]{0}', space=vmem, size = 0x4000, scoped, tag = 'output window, operand 0']
    %8 = vsyncpa [#allocation3], 0
    %s9 = scalar_lea.sflag [#allocation3], 1
    %10 = vsyncpa %s9, 0
    %11 = vsyncpa [#allocation6], 0
    %s12 = scalar_lea.sflag [#allocation6], 1
    %13 = vsyncpa %s12, 0
    %14 = vsyncpa [#allocation4], 0
    %s15 = scalar_lea.sflag [#allocation4], 1
    %16 = vsyncpa %s15, 0
    loop: start=0, step=1, limit=4
    $region2: #{tpu_custom_call.1} parent=1 // loop_pre_header
      _
    $region3: #{tpu_custom_call.1} parent=1 // loop_header
      %s18 = sphi 0, %s22
      %p19 = scmp.ge.s32.totalorder %s18, 4
      %s25 = sphi 0, %s44
      %s26 = sphi 0, %s40
      %s27 = sphi 0, %s36
      %s28 = sphi 0, %s25
      %s29 = sphi 0, %s26
      %s30 = sphi 0, %s27
      %s31 = sphi 0, %s28
      %s32 = sphi 0, %s29
      %s33 = sphi 0, %s30
      %s49 = sphi 0, %s51
      %s52 = sphi 0, %s49
      %s53 = sphi 0, %s52
      %s69 = sphi 0, %s53
      %s77 = sphi 0, %s79
      %s80 = sphi 0, %s77
      %s81 = sphi 0, %s80
      %s97 = sphi 0, %s81
      %s105 = sphi 0, %s107
      %s108 = sphi 0, %s105
      %s109 = sphi 0, %s108
      %s125 = sphi 0, %s109
      %s133 = sphi 0, %s135
      %s136 = sphi 0, %s133
      %s137 = sphi 0, %s136
      %s153 = sphi 0, %s137
    $region4: #{tpu_custom_call.1} parent=1 // loop_header_branch
      %21 = sbr.rel (%p19) target = $region8
    $region5: #{tpu_custom_call.1} parent=1 // loop_body
      %s23 = ssub.s32 %s18, 1
      %s24 = ssub.s32 %s18, 2
      %s34 = sadd.s32 1, %s27
      %p35 = scmp.ge.s32.totalorder %s34, 1
      %s36 = scalar_select %p35, 0, %s34
      %s37 = sadd.s32 1, %s26
      %s38 = scalar_select %p35, %s37, %s26
      %p39 = scmp.ge.s32.totalorder %s38, 1
      %s40 = scalar_select %p39, 0, %s38
      %s41 = sadd.s32 1, %s25
      %s42 = scalar_select %p39, %s41, %s25
      %p43 = scmp.ge.s32.totalorder %s42, 2
      %s44 = scalar_select %p43, 0, %s42
      %s45 = ssub.s32 %s25, %s44
      %s46 = ssub.s32 %s26, %s40
      %s47 = sor.u32 %s45, %s46
      %p48 = scmp.eq.s32.totalorder %s47, 0
      %s50 = sadd.s32 %s49, 1
      %s51 = scalar_select %p48, %s49, %s50
      %p54 = pneg %p48
      %p55 = scmp.eq.s32.totalorder %s18, 1
      %p56 = por %p54, %p55
      %p57 = scmp.ne.s32.totalorder %s49, %s52
      %p58 = scmp.eq.s32.totalorder %s18, 0
      %p59 = por %p57, %p58
      %p60 = scmp.ne.s32.totalorder %s49, %s52
      %p61 = scmp.eq.s32.totalorder %s23, 1
      %p62 = por %p60, %p61
      %p63 = scmp.ne.s32.totalorder %s52, %s53
      %p64 = scmp.eq.s32.totalorder %s23, 0
      %p65 = por %p63, %p64
      %p66 = scmp.ne.s32.totalorder %s52, %s53
      %p67 = scmp.eq.s32.totalorder %s24, 1
      %p68 = por %p66, %p67
      %p70 = scmp.ne.s32.totalorder %s53, %s69
      %p71 = scmp.eq.s32.totalorder %s24, 0
      %p72 = por %p70, %p71
      %s73 = ssub.s32 %s25, %s44
      %s74 = ssub.s32 %s27, %s36
      %s75 = sor.u32 %s73, %s74
      %p76 = scmp.eq.s32.totalorder %s75, 0
      %s78 = sadd.s32 %s77, 1
      %s79 = scalar_select %p76, %s77, %s78
      %p82 = pneg %p76
      %p83 = scmp.eq.s32.totalorder %s18, 1
      %p84 = por %p82, %p83
      %p85 = scmp.ne.s32.totalorder %s77, %s80
      %p86 = scmp.eq.s32.totalorder %s18, 0
      %p87 = por %p85, %p86
      %p88 = scmp.ne.s32.totalorder %s77, %s80
      %p89 = scmp.eq.s32.totalorder %s23, 1
      %p90 = por %p88, %p89
      %p91 = scmp.ne.s32.totalorder %s80, %s81
      %p92 = scmp.eq.s32.totalorder %s23, 0
      %p93 = por %p91, %p92
      %p94 = scmp.ne.s32.totalorder %s80, %s81
      %p95 = scmp.eq.s32.totalorder %s24, 1
      %p96 = por %p94, %p95
      %p98 = scmp.ne.s32.totalorder %s81, %s97
      %p99 = scmp.eq.s32.totalorder %s24, 0
      %p100 = por %p98, %p99
      %s101 = ssub.s32 %s25, %s44
      %s102 = ssub.s32 %s27, %s36
      %s103 = sor.u32 %s101, %s102
      %p104 = scmp.eq.s32.totalorder %s103, 0
      %s106 = sadd.s32 %s105, 1
      %s107 = scalar_select %p104, %s105, %s106
      %p110 = pneg %p104
      %p111 = scmp.eq.s32.totalorder %s18, 1
      %p112 = por %p110, %p111
      %p113 = scmp.ne.s32.totalorder %s105, %s108
      %p114 = scmp.eq.s32.totalorder %s18, 0
      %p115 = por %p113, %p114
      %p116 = scmp.ne.s32.totalorder %s105, %s108
      %p117 = scmp.eq.s32.totalorder %s23, 1
      %p118 = por %p116, %p117
      %p119 = scmp.ne.s32.totalorder %s108, %s109
      %p120 = scmp.eq.s32.totalorder %s23, 0
      %p121 = por %p119, %p120
      %p122 = scmp.ne.s32.totalorder %s108, %s109
      %p123 = scmp.eq.s32.totalorder %s24, 1
      %p124 = por %p122, %p123
      %p126 = scmp.ne.s32.totalorder %s109, %s125
      %p127 = scmp.eq.s32.totalorder %s24, 0
      %p128 = por %p126, %p127
      %s129 = ssub.s32 %s25, %s44
      %s130 = ssub.s32 %s26, %s40
      %s131 = sor.u32 %s129, %s130
      %p132 = scmp.eq.s32.totalorder %s131, 0
      %s134 = sadd.s32 %s133, 1
      %s135 = scalar_select %p132, %s133, %s134
      %p138 = pneg %p132
      %p139 = scmp.eq.s32.totalorder %s18, 1
      %p140 = por %p138, %p139
      %p141 = scmp.ne.s32.totalorder %s133, %s136
      %p142 = scmp.eq.s32.totalorder %s18, 0
      %p143 = por %p141, %p142
      %p144 = scmp.ne.s32.totalorder %s133, %s136
      %p145 = scmp.eq.s32.totalorder %s23, 1
      %p146 = por %p144, %p145
      %p147 = scmp.ne.s32.totalorder %s136, %s137
      %p148 = scmp.eq.s32.totalorder %s23, 0
      %p149 = por %p147, %p148
      %p150 = scmp.ne.s32.totalorder %s136, %s137
      %p151 = scmp.eq.s32.totalorder %s24, 1
      %p152 = por %p150, %p151
      %p154 = scmp.ne.s32.totalorder %s137, %s153
      %p155 = scmp.eq.s32.totalorder %s24, 0
      %p156 = por %p154, %p155
      %p157 = scmp.le.s32.totalorder 1, %s18
      %p158 = scmp.lt.s32.totalorder %s18, 3
      %p159 = pnand %p157, %p158
      %p160 = pneg %p159
      // Predicated region
      $region9: #{tpu_custom_call.1} parent=5 // pred_check
        _
      $region10: #{tpu_custom_call.1} parent=5 // pred_check_branch
        %162 = sbr.rel (%p159) target = $region12
      $region11: #{tpu_custom_call.1} parent=5 // pred_region
        %s163 = ssub.s32 %s18, 1
      $region12: #{tpu_custom_call.1} parent=5 // pred_fallthru
        _
      %p164 = scmp.lt.s32.totalorder %s18, 2
      // Predicated region
      $region13: #{tpu_custom_call.1} parent=5 // pred_check
        %p165 = pneg %p164
      $region14: #{tpu_custom_call.1} parent=5 // pred_check_branch
        %167 = sbr.rel (%p165) target = $region16
      $region15: #{tpu_custom_call.1} parent=5 // pred_region
        // Predicated region
        $region17: #{tpu_custom_call.1} parent=15 // pred_check
          %p168 = pneg %p59
        $region18: #{tpu_custom_call.1} parent=15 // pred_check_branch
          %170 = sbr.rel (%p168) target = $region20
        $region19: #{tpu_custom_call.1} parent=15 // pred_region
          %s171 = sand.u32 %s49, 1
          %s172 = scalar_lea.sflag [#allocation3], %s171
          %s173 = sand.u32 %s49, 1
          %s174 = smul.addr %s173, 16
          %s175 = scalar_lea.vmem [#allocation2], %s174
          %s176 = smul.u32 2, %s26
          %s178 = ssub.s32 256, 256
          %179 = vsyncadd %s172, %s178
          %s180 = smul.addr %s25, 2
          %s181 = sadd.s32 %s176, %s180
          %s182 = smul.addr %s181, 128
          %s183 = scalar_lea.hbm %s0, %s182
          %s184 = sshll.u32 %s175, 4
          %s185 = int_to_ptr.vmem [resolvable:$true] %s184
          %190 = dma.hbm_to_vmem [thread:$0]  %s183, 256, %s185, %s172, 128, 128, 8
        $region20: #{tpu_custom_call.1} parent=15 // pred_fallthru
          _
        // Predicated region
        $region21: #{tpu_custom_call.1} parent=15 // pred_check
          %p191 = pneg %p87
        $region22: #{tpu_custom_call.1} parent=15 // pred_check_branch
          %193 = sbr.rel (%p191) target = $region24
        $region23: #{tpu_custom_call.1} parent=15 // pred_region
          %s194 = sand.u32 %s18, 1
          %s195 = scalar_lea.sflag [#allocation6], %s194
          %s196 = sand.u32 %s77, 1
          %s197 = smul.addr %s196, 256
          %s198 = scalar_lea.vmem [#allocation5], %s197
          %s199 = smul.u32 2, %s27
          %s201 = ssub.s32 4096, 4096
          %202 = vsyncadd %s195, %s201
          %s203 = smul.addr %s25, 32
          %s204 = sadd.s32 %s199, %s203
          %s205 = smul.addr %s204, 128
          %s206 = scalar_lea.hbm %s1, %s205
          %s207 = sshll.u32 %s198, 4
          %s208 = int_to_ptr.vmem [resolvable:$true] %s207
          %213 = dma.hbm_to_vmem [thread:$0]  %s206, 4096, %s208, %s195, 256, 256, 16
        $region24: #{tpu_custom_call.1} parent=15 // pred_fallthru
          _
        // Predicated region
        $region25: #{tpu_custom_call.1} parent=15 // pred_check
          %p214 = pneg %p115
        $region26: #{tpu_custom_call.1} parent=15 // pred_check_branch
          %216 = sbr.rel (%p214) target = $region28
        $region27: #{tpu_custom_call.1} parent=15 // pred_region
          %s217 = sand.u32 %s18, 1
          %s218 = scalar_lea.sflag [#allocation6], %s217
          %s219 = sand.u32 %s105, 1
          %s220 = smul.addr %s219, 256
          %s221 = scalar_lea.vmem [#allocation7], %s220
          %s222 = smul.u32 32, %s27
          %s224 = ssub.s32 4096, 4096
          %225 = vsyncadd %s218, %s224
          %s226 = smul.addr %s25, 32
          %s227 = sadd.s32 %s222, %s226
          %s228 = smul.addr %s227, 128
          %s229 = scalar_lea.hbm %s2, %s228
          %s230 = sshll.u32 %s221, 4
          %s231 = int_to_ptr.vmem [resolvable:$true] %s230
          %236 = dma.hbm_to_vmem [thread:$0]  %s229, 4096, %s231, %s218, 128, 128, 8
        $region28: #{tpu_custom_call.1} parent=15 // pred_fallthru
          _
      $region16: #{tpu_custom_call.1} parent=5 // pred_fallthru
        _
      %p237 = scmp.le.s32.totalorder 1, %s18
      %p238 = scmp.lt.s32.totalorder %s18, 3
      %p239 = pnand %p237, %p238
      %p240 = pneg %p239
      // Predicated region
      $region29: #{tpu_custom_call.1} parent=5 // pred_check
        _
      $region30: #{tpu_custom_call.1} parent=5 // pred_check_branch
        %242 = sbr.rel (%p239) target = $region32
      $region31: #{tpu_custom_call.1} parent=5 // pred_region
        %s243 = ssub.s32 %s18, 1
        %s244 = sand.u32 %s52, 1
        %s245 = scalar_lea.sflag [#allocation3], %s244
        %s246 = sand.u32 %s52, 1
        %s247 = smul.addr %s246, 16
        %s248 = scalar_lea.vmem [#allocation2], %s247
        // Predicated region
        $region33: #{tpu_custom_call.1} parent=31 // pred_check
          %p249 = pneg %p65
        $region34: #{tpu_custom_call.1} parent=31 // pred_check_branch
          %251 = sbr.rel (%p249) target = $region36
        $region35: #{tpu_custom_call.1} parent=31 // pred_region
          %252 = dma.done %s245, 256
        $region36: #{tpu_custom_call.1} parent=31 // pred_fallthru
          _
        %s253 = sand.u32 %s23, 1
        %s254 = scalar_lea.sflag [#allocation6], %s253
        %s255 = sand.u32 %s80, 1
        %s256 = smul.addr %s255, 256
        %s257 = scalar_lea.vmem [#allocation5], %s256
        // Predicated region
        $region37: #{tpu_custom_call.1} parent=31 // pred_check
          %p258 = pneg %p93
        $region38: #{tpu_custom_call.1} parent=31 // pred_check_branch
          %260 = sbr.rel (%p258) target = $region40
        $region39: #{tpu_custom_call.1} parent=31 // pred_region
          %261 = dma.done %s254, 4096
        $region40: #{tpu_custom_call.1} parent=31 // pred_fallthru
          _
        %s262 = sand.u32 %s23, 1
        %s263 = scalar_lea.sflag [#allocation6], %s262
        %s264 = sand.u32 %s108, 1
        %s265 = smul.addr %s264, 256
        %s266 = scalar_lea.vmem [#allocation7], %s265
        // Predicated region
        $region41: #{tpu_custom_call.1} parent=31 // pred_check
          %p267 = pneg %p121
        $region42: #{tpu_custom_call.1} parent=31 // pred_check_branch
          %269 = sbr.rel (%p267) target = $region44
        $region43: #{tpu_custom_call.1} parent=31 // pred_region
          %270 = dma.done %s263, 4096
        $region44: #{tpu_custom_call.1} parent=31 // pred_fallthru
          _
        %s271 = sand.u32 %s52, 1
        %s272 = scalar_lea.sflag [#allocation3], %s271
        %s273 = sand.u32 %s52, 1
        %s274 = smul.addr %s273, 16
        %s275 = scalar_lea.vmem [#allocation2], %s274
        %p276 = pneg %p65
        %p277 = pneg %p62
        %s278 = sand.u32 %s23, 1
        %s279 = scalar_lea.sflag [#allocation6], %s278
        %s280 = sand.u32 %s80, 1
        %s281 = smul.addr %s280, 256
        %s282 = scalar_lea.vmem [#allocation5], %s281
        %p283 = pneg %p93
        %p284 = pneg %p90
        %s285 = sand.u32 %s23, 1
        %s286 = scalar_lea.sflag [#allocation6], %s285
        %s287 = sand.u32 %s108, 1
        %s288 = smul.addr %s287, 256
        %s289 = scalar_lea.vmem [#allocation7], %s288
        %p290 = pneg %p121
        %p291 = pneg %p118
        %p292 = pneg %p149
        %p293 = pneg %p146
        %s294 = sand.u32 %s136, 1
        %s295 = scalar_lea.sflag [#allocation4], %s294
        %s296 = sand.u32 %s136, 1
        %s297 = smul.addr %s296, 16
        %s298 = scalar_lea.vmem [#allocation8], %s297
        %s299 = smul.u32 2, %s29
        %s300 = smul.u32 2, %s30
        %s301 = smul.u32 32, %s30
        %s302 = smul.u32 2, %s29
        %v303 = vld [vmem:[%s266] sm:$0xff]
        %v304 = vld [vmem:[%s266 + $0x8] sm:$0xff]
        %v305 = vld [vmem:[%s266 + $0x10] sm:$0xff]
        %v306 = vld [vmem:[%s266 + $0x18] sm:$0xff]
        %v307 = vld [vmem:[%s266 + $0x20] sm:$0xff]
        %v308 = vld [vmem:[%s266 + $0x28] sm:$0xff]
        %v309 = vld [vmem:[%s266 + $0x30] sm:$0xff]
        %v310 = vld [vmem:[%s266 + $0x38] sm:$0xff]
        %v311 = vld [vmem:[%s266 + $0x40] sm:$0xff]
        %v312 = vld [vmem:[%s266 + $0x48] sm:$0xff]
        %v313 = vld [vmem:[%s266 + $0x50] sm:$0xff]
        %v314 = vld [vmem:[%s266 + $0x58] sm:$0xff]
        %v315 = vld [vmem:[%s266 + $0x60] sm:$0xff]
        %v316 = vld [vmem:[%s266 + $0x68] sm:$0xff]
        %v317 = vld [vmem:[%s266 + $0x70] sm:$0xff]
        %v318 = vld [vmem:[%s266 + $0x78] sm:$0xff]
        %v319 = vld [vmem:[%s266 + $0x80] sm:$0xff]
        %v320 = vld [vmem:[%s266 + $0x88] sm:$0xff]
        %v321 = vld [vmem:[%s266 + $0x90] sm:$0xff]
        %v322 = vld [vmem:[%s266 + $0x98] sm:$0xff]
        %v323 = vld [vmem:[%s266 + $0xa0] sm:$0xff]
        %v324 = vld [vmem:[%s266 + $0xa8] sm:$0xff]
        %v325 = vld [vmem:[%s266 + $0xb0] sm:$0xff]
        %v326 = vld [vmem:[%s266 + $0xb8] sm:$0xff]
        %v327 = vld [vmem:[%s266 + $0xc0] sm:$0xff]
        %v328 = vld [vmem:[%s266 + $0xc8] sm:$0xff]
        %v329 = vld [vmem:[%s266 + $0xd0] sm:$0xff]
        %v330 = vld [vmem:[%s266 + $0xd8] sm:$0xff]
        %v331 = vld [vmem:[%s266 + $0xe0] sm:$0xff]
        %v332 = vld [vmem:[%s266 + $0xe8] sm:$0xff]
        %v333 = vld [vmem:[%s266 + $0xf0] sm:$0xff]
        %v334 = vld [vmem:[%s266 + $0xf8] sm:$0xff]
        %v335 = vld [vmem:[%s248] sm:$0xff]
        %v336 = vld [vmem:[%s248 + $0x8] sm:$0xff]
        %v337 = vld [vmem:[%s257] sm:$0xff]
        %v338 = vld [vmem:[%s257 + $0x8] sm:$0xff]
        %v339 = vld [vmem:[%s257 + $0x10] sm:$0xff]
        %v340 = vld [vmem:[%s257 + $0x18] sm:$0xff]
        %v341 = vld [vmem:[%s257 + $0x20] sm:$0xff]
        %v342 = vld [vmem:[%s257 + $0x28] sm:$0xff]
        %v343 = vld [vmem:[%s257 + $0x30] sm:$0xff]
        %v344 = vld [vmem:[%s257 + $0x38] sm:$0xff]
        %v345 = vld [vmem:[%s257 + $0x40] sm:$0xff]
        %v346 = vld [vmem:[%s257 + $0x48] sm:$0xff]
        %v347 = vld [vmem:[%s257 + $0x50] sm:$0xff]
        %v348 = vld [vmem:[%s257 + $0x58] sm:$0xff]
        %v349 = vld [vmem:[%s257 + $0x60] sm:$0xff]
        %v350 = vld [vmem:[%s257 + $0x68] sm:$0xff]
        %v351 = vld [vmem:[%s257 + $0x70] sm:$0xff]
        %v352 = vld [vmem:[%s257 + $0x78] sm:$0xff]
        %v353 = vld [vmem:[%s257 + $0x80] sm:$0xff]
        %v354 = vld [vmem:[%s257 + $0x88] sm:$0xff]
        %v355 = vld [vmem:[%s257 + $0x90] sm:$0xff]
        %v356 = vld [vmem:[%s257 + $0x98] sm:$0xff]
        %v357 = vld [vmem:[%s257 + $0xa0] sm:$0xff]
        %v358 = vld [vmem:[%s257 + $0xa8] sm:$0xff]
        %v359 = vld [vmem:[%s257 + $0xb0] sm:$0xff]
        %v360 = vld [vmem:[%s257 + $0xb8] sm:$0xff]
        %v361 = vld [vmem:[%s257 + $0xc0] sm:$0xff]
        %v362 = vld [vmem:[%s257 + $0xc8] sm:$0xff]
        %v363 = vld [vmem:[%s257 + $0xd0] sm:$0xff]
        %v364 = vld [vmem:[%s257 + $0xd8] sm:$0xff]
        %v365 = vld [vmem:[%s257 + $0xe0] sm:$0xff]
        %v366 = vld [vmem:[%s257 + $0xe8] sm:$0xff]
        %v367 = vld [vmem:[%s257 + $0xf0] sm:$0xff]
        %v368 = vld [vmem:[%s257 + $0xf8] sm:$0xff]
        %369 = vmatprep.subr.mxu0 %v338
        %370 = vmatpush1.msra.mxu0 %v337
        %371 = vmatprep.subr.mxu0 %v340
        %372 = vmatpush1.msra.mxu0 %v339
        %373 = vmatprep.subr.mxu0 %v342
        %374 = vmatpush1.msra.mxu0 %v341
        %375 = vmatprep.subr.mxu0 %v344
        %376 = vmatpush1.msra.mxu0 %v343
        %377 = vmatprep.subr.mxu0 %v346
        %378 = vmatpush1.msra.mxu0 %v345
        %379 = vmatprep.subr.mxu0 %v348
        %380 = vmatpush1.msra.mxu0 %v347
        %381 = vmatprep.subr.mxu0 %v350
        %382 = vmatpush1.msra.mxu0 %v349
        %383 = vmatprep.subr.mxu0 %v352
        %384 = vmatpush1.msra.mxu0 %v351
        %385 = vmatprep.subr.mxu0 %v354
        %386 = vmatpush1.msra.mxu0 %v353
        %387 = vmatprep.subr.mxu0 %v356
        %388 = vmatpush1.msra.mxu0 %v355
        %389 = vmatprep.subr.mxu0 %v358
        %390 = vmatpush1.msra.mxu0 %v357
        %391 = vmatprep.subr.mxu0 %v360
        %392 = vmatpush1.msra.mxu0 %v359
        %393 = vmatprep.subr.mxu0 %v362
        %394 = vmatpush1.msra.mxu0 %v361
        %395 = vmatprep.subr.mxu0 %v364
        %396 = vmatpush1.msra.mxu0 %v363
        %397 = vmatprep.subr.mxu0 %v366
        %398 = vmatpush1.msra.mxu0 %v365
        %399 = vmatprep.subr.mxu0 %v368
        %400 = vmatpush1.msra.mxu0 %v367
        %401 = vmatprep.subr.mxu0 0.0
        %402 = vmatpush1.msra.mxu0 0.0
        %403 = vmatprep.subr.mxu0 0.0
        %404 = vmatpush1.msra.mxu0 0.0
        %405 = vmatprep.subr.mxu0 0.0
        %406 = vmatpush1.msra.mxu0 0.0
        %407 = vmatprep.subr.mxu0 0.0
        %408 = vmatpush1.msra.mxu0 0.0
        %409 = vmatprep.subr.mxu0 0.0
        %410 = vmatpush1.msra.mxu0 0.0
        %411 = vmatprep.subr.mxu0 0.0
        %412 = vmatpush1.msra.mxu0 0.0
        %413 = vmatprep.subr.mxu0 0.0
        %414 = vmatpush1.msra.mxu0 0.0
        %415 = vmatprep.subr.mxu0 0.0
        %416 = vmatpush1.msra.mxu0 0.0
        %417 = vmatprep.subr.mxu0 0.0
        %418 = vmatpush1.msra.mxu0 0.0
        %419 = vmatprep.subr.mxu0 0.0
        %420 = vmatpush1.msra.mxu0 0.0
        %421 = vmatprep.subr.mxu0 0.0
        %422 = vmatpush1.msra.mxu0 0.0
        %423 = vmatprep.subr.mxu0 0.0
        %424 = vmatpush1.msra.mxu0 0.0
        %425 = vmatprep.subr.mxu0 0.0
        %426 = vmatpush1.msra.mxu0 0.0
        %427 = vmatprep.subr.mxu0 0.0
        %428 = vmatpush1.msra.mxu0 0.0
        %429 = vmatprep.subr.mxu0 0.0
        %430 = vmatpush1.msra.mxu0 0.0
        %431 = vmatprep.subr.mxu0 0.0
        %432 = vmatpush1.msra.mxu0 0.0
        %433 = vmatprep.mubr.f32.mxu0 0.0
        %434 = vmatmul.mubr.f32.gmra.mrb[0].mxu0 %v335
        %v435 = vpop.f32.mrb[0].mxu0
        %v436 = vadd.f32 0.0, %v435
        %v437 = vpop.f32.mrb[0].mxu0
        %v438 = vadd.f32 0.0, %v437
        %439 = vmatprep.mubr.f32.mxu0 0.0
        %440 = vmatmul.mubr.f32.gmra.mrb[0].mxu0 %v336
        %v441 = vpop.f32.mrb[0].mxu0
        %v442 = vadd.f32 0.0, %v441
        %v443 = vpop.f32.mrb[0].mxu0
        %v444 = vadd.f32 0.0, %v443
        %445 = vdwg.mxu0
        %v446 = vmul.f32 %v436, 0.5
        %v447 = vmul.f32 %v438, 0.5
        %v448 = vmul.f32 %v442, 0.5
        %v449 = vmul.f32 %v444, 0.5
        %v450 = vmul.f32 %v436, 0.044715
        %v451 = vmul.f32 %v438, 0.044715
        %v452 = vmul.f32 %v442, 0.044715
        %v453 = vmul.f32 %v444, 0.044715
        %v454 = vmul.f32 %v450, %v436
        %v455 = vmul.f32 %v451, %v438
        %v456 = vmul.f32 %v452, %v442
        %v457 = vmul.f32 %v453, %v444
        %v458 = vmul.f32 %v454, %v436
        %v459 = vmul.f32 %v455, %v438
        %v460 = vmul.f32 %v456, %v442
        %v461 = vmul.f32 %v457, %v444
        %v462 = vadd.f32 %v436, %v458
        %v463 = vadd.f32 %v438, %v459
        %v464 = vadd.f32 %v442, %v460
        %v465 = vadd.f32 %v444, %v461
        %v466 = vmul.f32 %v462, 0.7978846
        %v467 = vmul.f32 %v463, 0.7978846
        %v468 = vmul.f32 %v464, 0.7978846
        %v469 = vmul.f32 %v465, 0.7978846
        %v470 = vtanh.pop %v466
        %v471 = vtanh.pop %v467
        %v472 = vtanh.pop %v468
        %v473 = vtanh.pop %v469
        %v474 = vadd.f32 %v470, 1.0
        %v475 = vadd.f32 %v471, 1.0
        %v476 = vadd.f32 %v472, 1.0
        %v477 = vadd.f32 %v473, 1.0
        %v478 = vmul.f32 %v446, %v474
        %v479 = vmul.f32 %v447, %v475
        %v480 = vmul.f32 %v448, %v476
        %v481 = vmul.f32 %v449, %v477
        %482 = vmatprep.subr.mxu0 0.0
        %483 = vmatpush1.msra.mxu0 %v303
        %484 = vmatprep.subr.mxu0 0.0
        %485 = vmatpush1.msra.mxu0 %v304
        %486 = vmatprep.subr.mxu0 0.0
        %487 = vmatpush1.msra.mxu0 %v305
        %488 = vmatprep.subr.mxu0 0.0
        %489 = vmatpush1.msra.mxu0 %v306
        %490 = vmatprep.subr.mxu0 0.0
        %491 = vmatpush1.msra.mxu0 %v307
        %492 = vmatprep.subr.mxu0 0.0
        %493 = vmatpush1.msra.mxu0 %v308
        %494 = vmatprep.subr.mxu0 0.0
        %495 = vmatpush1.msra.mxu0 %v309
        %496 = vmatprep.subr.mxu0 0.0
        %497 = vmatpush1.msra.mxu0 %v310
        %498 = vmatprep.subr.mxu0 0.0
        %499 = vmatpush1.msra.mxu0 %v311
        %500 = vmatprep.subr.mxu0 0.0
        %501 = vmatpush1.msra.mxu0 %v312
        %502 = vmatprep.subr.mxu0 0.0
        %503 = vmatpush1.msra.mxu0 %v313
        %504 = vmatprep.subr.mxu0 0.0
        %505 = vmatpush1.msra.mxu0 %v314
        %506 = vmatprep.subr.mxu0 0.0
        %507 = vmatpush1.msra.mxu0 %v315
        %508 = vmatprep.subr.mxu0 0.0
        %509 = vmatpush1.msra.mxu0 %v316
        %510 = vmatprep.subr.mxu0 0.0
        %511 = vmatpush1.msra.mxu0 %v317
        %512 = vmatprep.subr.mxu0 0.0
        %513 = vmatpush1.msra.mxu0 %v318
        %514 = vmatprep.subr.mxu0 0.0
        %515 = vmatpush1.msra.mxu0 %v319
        %516 = vmatprep.subr.mxu0 0.0
        %517 = vmatpush1.msra.mxu0 %v320
        %518 = vmatprep.subr.mxu0 0.0
        %519 = vmatpush1.msra.mxu0 %v321
        %520 = vmatprep.subr.mxu0 0.0
        %521 = vmatpush1.msra.mxu0 %v322
        %522 = vmatprep.subr.mxu0 0.0
        %523 = vmatpush1.msra.mxu0 %v323
        %524 = vmatprep.subr.mxu0 0.0
        %525 = vmatpush1.msra.mxu0 %v324
        %526 = vmatprep.subr.mxu0 0.0
        %527 = vmatpush1.msra.mxu0 %v325
        %528 = vmatprep.subr.mxu0 0.0
        %529 = vmatpush1.msra.mxu0 %v326
        %530 = vmatprep.subr.mxu0 0.0
        %531 = vmatpush1.msra.mxu0 %v327
        %532 = vmatprep.subr.mxu0 0.0
        %533 = vmatpush1.msra.mxu0 %v328
        %534 = vmatprep.subr.mxu0 0.0
        %535 = vmatpush1.msra.mxu0 %v329
        %536 = vmatprep.subr.mxu0 0.0
        %537 = vmatpush1.msra.mxu0 %v330
        %538 = vmatprep.subr.mxu0 0.0
        %539 = vmatpush1.msra.mxu0 %v331
        %540 = vmatprep.subr.mxu0 0.0
        %541 = vmatpush1.msra.mxu0 %v332
        %542 = vmatprep.subr.mxu0 0.0
        %543 = vmatpush1.msra.mxu0 %v333
        %544 = vmatprep.subr.mxu0 0.0
        %545 = vmatpush1.msra.mxu0 %v334
        %546 = vmatprep.mubr.f32.mxu0 %v479
        %547 = vmatmul.mubr.f32.gmra.mrb[0].mxu0 %v478
        %v548 = vpop.f32.mrb[0].mxu0
        %v549 = vadd.f32 0.0, %v548
        %v550 = vpop.f32.mrb[0].mxu0
        %551 = vmatprep.mubr.f32.mxu0 %v481
        %552 = vmatmul.mubr.f32.gmra.mrb[0].mxu0 %v480
        %v553 = vpop.f32.mrb[0].mxu0
        %v554 = vadd.f32 0.0, %v553
        %v555 = vpop.f32.mrb[0].mxu0
        %556 = vdwg.mxu0
        %p557 = scmp.eq.s32.totalorder %s30, 0
        // Predicated region
        $region45: #{tpu_custom_call.1} parent=31 // pred_check
          %p558 = pneg %p557
        $region46: #{tpu_custom_call.1} parent=31 // pred_check_branch
          %560 = sbr.rel (%p558) target = $region48
        $region47: #{tpu_custom_call.1} parent=31 // pred_region
          %561 = vst [vmem:[%s298] sm:$0xff] %v549
          %562 = vst [vmem:[%s298 + $0x8] sm:$0xff] %v554
        $region48: #{tpu_custom_call.1} parent=31 // pred_fallthru
          _
        %p563 = scmp.gt.s32.totalorder %s30, 0
        // Predicated region
        $region49: #{tpu_custom_call.1} parent=31 // pred_check
          %p564 = pneg %p563
        $region50: #{tpu_custom_call.1} parent=31 // pred_check_branch
          %566 = sbr.rel (%p564) target = $region52
        $region51: #{tpu_custom_call.1} parent=31 // pred_region
          %v567 = vld [vmem:[%s298] sm:$0xff]
          %v568 = vld [vmem:[%s298 + $0x8] sm:$0xff]
          %v569 = vadd.f32 %v567, %v549
          %v570 = vadd.f32 %v568, %v554
          %571 = vst [vmem:[%s298] sm:$0xff] %v569
          %572 = vst [vmem:[%s298 + $0x8] sm:$0xff] %v570
        $region52: #{tpu_custom_call.1} parent=31 // pred_fallthru
          _
        %s573 = sand.u32 %s136, 1
        %s574 = scalar_lea.sflag [#allocation4], %s573
        %s575 = sand.u32 %s136, 1
        %s576 = smul.addr %s575, 16
        %s577 = scalar_lea.vmem [#allocation8], %s576
        // Predicated region
        $region53: #{tpu_custom_call.1} parent=31 // pred_check
          %p578 = pneg %p146
        $region54: #{tpu_custom_call.1} parent=31 // pred_check_branch
          %580 = sbr.rel (%p578) target = $region56
        $region55: #{tpu_custom_call.1} parent=31 // pred_region
          %s581 = smul.u32 2, %s29
          %s583 = ssub.s32 256, 256
          %584 = vsyncadd %s574, %s583
          %s585 = smul.addr %s28, 2
          %s586 = sadd.s32 %s581, %s585
          %s587 = smul.addr %s586, 128
          %s588 = scalar_lea.hbm %s3, %s587
          %s589 = sshll.u32 %s577, 4
          %s590 = int_to_ptr.vmem [resolvable:$true] %s589
          %595 = dma.vmem_to_hbm [thread:$0]  %s590, 256, %s588, %s574, 128, 128, 8
        $region56: #{tpu_custom_call.1} parent=31 // pred_fallthru
          _
      $region32: #{tpu_custom_call.1} parent=5 // pred_fallthru
        _
      %p596 = scmp.le.s32.totalorder 2, %s18
      // Predicated region
      $region57: #{tpu_custom_call.1} parent=5 // pred_check
        %p597 = pneg %p596
      $region58: #{tpu_custom_call.1} parent=5 // pred_check_branch
        %599 = sbr.rel (%p597) target = $region60
      $region59: #{tpu_custom_call.1} parent=5 // pred_region
        %s600 = ssub.s32 %s18, 2
        // Predicated region
        $region61: #{tpu_custom_call.1} parent=59 // pred_check
          %p601 = pneg %p152
        $region62: #{tpu_custom_call.1} parent=59 // pred_check_branch
          %603 = sbr.rel (%p601) target = $region64
        $region63: #{tpu_custom_call.1} parent=59 // pred_region
          %s604 = sand.u32 %s137, 1
          %s605 = scalar_lea.sflag [#allocation4], %s604
          %s606 = sand.u32 %s137, 1
          %s607 = smul.addr %s606, 16
          %s608 = scalar_lea.vmem [#allocation8], %s607
          %609 = dma.done %s605, 256
        $region64: #{tpu_custom_call.1} parent=59 // pred_fallthru
          _
      $region60: #{tpu_custom_call.1} parent=5 // pred_fallthru
        _
    $region6: #{tpu_custom_call.1} parent=1 // loop_footer
      %s22 = sadd.s32 1, %s18
    $region7: #{tpu_custom_call.1} parent=1 // loop_footer_branch
      %17 = sbr.rel target = $region3
    $region8: #{tpu_custom_call.1} parent=1 // loop_exit
      _
    %610 = vsyncpa [#allocation3], 1
    %s611 = scalar_lea.sflag [#allocation3], 1
    %612 = vsyncpa %s611, 1
    %613 = vsyncpa [#allocation6], 1
    %s614 = scalar_lea.sflag [#allocation6], 1
    %615 = vsyncpa %s614, 1
    %616 = vsyncpa [#allocation4], 1
    %s617 = scalar_lea.sflag [#allocation4], 1
    %618 = vsyncpa %s617, 1

</llo_original>
